<compile_context>
chip_gen: v5e
topology: v5e:2x2
jax: 0.10.0
libtpu: 0.0.40
codegen_flags: <defaults>
</compile_context>

<pallas_src>
import math
import jax
import jax.numpy as jnp
from jax.experimental import pallas as pl
from jax.experimental.pallas import tpu as pltpu

# ---------------- config (mirrors Phaser.__init__ / __init_OLA__) -----------
SAMPLE_RATE = 1000
WINDOW_LENGTH = 0.05
OVERLAP = 0.75
MLP_WIDTH = 16
MLP_LAYERS = 3
NUM_FILTERS = 4                                              # self.K

HOPS_PER_FRAME = int(1 / (1 - OVERLAP))                      # 4
WINDOW_SIZE = HOPS_PER_FRAME * math.floor(WINDOW_LENGTH * SAMPLE_RATE / HOPS_PER_FRAME)  # 48
HOP_SIZE = WINDOW_SIZE // HOPS_PER_FRAME                     # 12
NFFT = 2 ** math.ceil(math.log2(WINDOW_SIZE) + 1)            # 128
NBINS = NFFT // 2 + 1                                        # 65
NBP = 128                                                    # lane-padded bin axis

MAX_ROW_TILE = 512                                           # frame rows per grid step
MXU_DTYPE = jnp.bfloat16                                     # matmul operands only


# ------------------------------ Pallas kernel --------------------------------
def phaser_freq_kernel(frames_ref, h_ref, dftf_ref, idft_ref, out_ref):
    # forward rDFT: ONE fused matmul (analysis window pre-folded into dftf),
    # bf16 operands, f32 accumulation.  (tile, NFFT) @ (NFFT, 2*NBP)
    fw = frames_ref[...].astype(MXU_DTYPE)
    xx = jnp.dot(fw, dftf_ref[...], preferred_element_type=jnp.float32)
    xr = xx[:, :NBP]
    xi = xx[:, NBP:]

    # H(t, k) is precomputed outside the kernel (parameter-only, per frame
    # row, NOT per batch); packed as [Hr | Hi] on lanes, kept in f32.
    hr = h_ref[:, :NBP]
    hi = h_ref[:, NBP:]

    # Y = X * H (complex pointwise), f32
    yr = xr * hr - xi * hi
    yi = xr * hi + xi * hr

    # inverse rDFT (weighted one-sided, synthesis window pre-folded):
    # ONE fused matmul  (tile, 2*NBP) @ (2*NBP, NFFT)
    yy = jnp.concatenate([yr, yi], axis=-1).astype(MXU_DTYPE)
    out_ref[...] = jnp.dot(yy, idft_ref[...], preferred_element_type=jnp.float32)


def _pick_row_tile(t_rows):
    # bf16 LHS packs 16 sublanes/vreg -> tile must be a multiple of 16 and at
    # least 128 rows (amortizes the ~0.35us per-grid-step overhead and fills
    # the 256-wide MXU).  Split the frame axis only when each half stays
    # >= 128 rows; the batch grid axis already provides a second "parallel"
    # block for v7x's two TensorCores.
    t16 = ((t_rows + 15) // 16) * 16
    if t16 <= 128:
        return 128
    if t16 > MAX_ROW_TILE:
        return MAX_ROW_TILE
    half = (((t16 + 1) // 2 + 15) // 16) * 16
    if half >= 128:
        return half
    return t16


def _phaser_pallas(frames, h_rows, dft_fwd, idft, row_tile):
    B, t_pad, _ = frames.shape
    n_t = t_pad // row_tile
    # frame-tile axis OUTER, batch axis INNER: the H block index is constant
    # across the inner batch loop, so it stays resident (fetched once per
    # frame tile instead of once per (batch, frame tile)).
    grid = (n_t, B)

    frame_in_spec = pl.BlockSpec((None, row_tile, NFFT), lambda t, b: (b, t, 0))
    frame_out_spec = pl.BlockSpec((None, row_tile, NFFT), lambda t, b: (b, t, 0))
    h_spec = pl.BlockSpec((row_tile, 2 * NBP), lambda t, b: (t, 0))
    # constant operands: constant index_map -> not re-DMA'd between steps
    dftf_spec = pl.BlockSpec((NFFT, 2 * NBP), lambda t, b: (0, 0))
    idft_spec = pl.BlockSpec((2 * NBP, NFFT), lambda t, b: (0, 0))

    return pl.pallas_call(
        phaser_freq_kernel,
        out_shape=jax.ShapeDtypeStruct((B, t_pad, NFFT), jnp.float32),
        grid=grid,
        in_specs=[frame_in_spec, h_spec, dftf_spec, idft_spec],
        out_specs=frame_out_spec,
        compiler_params=pltpu.CompilerParams(
            dimension_semantics=("parallel", "parallel")),
    )(frames, h_rows, dft_fwd, idft)


# ------------------------------ JAX glue --------------------------------------
def damped_oscillator(n, za, zb, damped=True):
    # Re( zb * za**n ), za/zb given as (re, im) pairs
    r = jnp.sqrt(za[0] ** 2 + za[1] ** 2)
    th = jnp.arctan2(za[1], za[0])
    mag = r ** n if damped else jnp.ones_like(n)
    ph = n * th
    return mag * (zb[0] * jnp.cos(ph) - zb[1] * jnp.sin(ph))


def mlp_forward(x, Ws, bs):
    h = x
    for W, b in zip(Ws[:-1], bs[:-1]):
        h = jnp.tanh(h @ W + b)
    return jnp.tanh(h @ Ws[-1] + bs[-1])


def biquad_response(b, a, z, normalise):
    num = b[0] + b[1] * z + b[2] * z * z
    den = 1.0 + a[0] * z + a[1] * z * z
    h = num / den
    if normalise:
        # TODO(synk): exact z_utils.Biquad normalisation is unavailable; use unit-DC-gain.
        h = h / jnp.abs(h[..., 0:1])
    return h


def phaser_forward(x, params):
    B, L = x.shape
    T = L // HOP_SIZE + 1                                    # num_hops

    # ---- LFO -> MLP waveshaper -> all-pass coefficient p (per frame) --------
    n = jnp.arange(T, dtype=jnp.float32).reshape(T, 1)
    lfo = damped_oscillator(n, params["za"], params["zb"], damped=True)
    ws = mlp_forward(lfo, params["Ws"], params["bs"])
    d = params["bias"] + params["depth"] * 0.5 * (1.0 + ws)  # (T, 1)
    p = (1.0 - jnp.tan(d)) / (1.0 + jnp.tan(d))              # (T, 1)

    # ---- transfer matrix H(t, k): parameter-only, hoisted out of the kernel,
    # ---- and NOT replicated over the batch --------------------------------
    k = jnp.arange(NBINS, dtype=jnp.float32)
    w = 2.0 * jnp.pi * k / NFFT
    z = jnp.exp(-1j * w).reshape(1, NBINS).astype(jnp.complex64)   # z^-1, onesided
    h1 = biquad_response(params["b1"], params["a1"], z, normalise=False)
    h2 = biquad_response(params["b2"], params["a2"], z, normalise=True)
    phi = jnp.maximum(params["phi"], 0.0)
    zphi = jnp.exp(-1j * w * phi).reshape(1, NBINS)                # z ** relu(phi)
    pc = p.astype(jnp.complex64)
    a = ((pc - z) / (1.0 - pc * z)) ** NUM_FILTERS                 # (T, NBINS)
    denom = 1.0 - zphi * jnp.abs(params["g2"]) * h2 * a
    H = h1 * (params["g1"] + h2 * a / denom)                       # (T, NBINS)
    Hr = jnp.pad(jnp.real(H).astype(jnp.float32), ((0, 0), (0, NBP - NBINS)))
    Hi = jnp.pad(jnp.imag(H).astype(jnp.float32), ((0, 0), (0, NBP - NBINS)))
    # TODO(synk): for v5e, H could be carried as bf16 to halve this DMA stream
    # (validate numerics first); kept f32 here for accuracy.
    h_rows = jnp.concatenate([Hr, Hi], axis=1)                     # (T, 2*NBP)

    # ---- window (torch.stft pads win_length -> n_fft, centered) -------------
    win = 0.5 * (1.0 - jnp.cos(2.0 * jnp.pi * jnp.arange(WINDOW_SIZE) / WINDOW_SIZE))
    lpad = (NFFT - WINDOW_SIZE) // 2
    win_pad = jnp.pad(win, (lpad, NFFT - WINDOW_SIZE - lpad)).astype(jnp.float32)

    # ---- STFT framing (torch.stft: center=True, pad_mode='constant') --------
    # TODO(synk): for long signals, move this 10.7x frame expansion into the
    # kernel (DMA contiguous audio chunks with memory_space=pl.ANY and build
    # the frame matrix in VMEM) to cut HBM traffic.
    x_pad = jnp.pad(x, ((0, 0), (NFFT // 2, NFFT // 2)))
    idx = (jnp.arange(T) * HOP_SIZE)[:, None] + jnp.arange(NFFT)[None, :]
    frames = x_pad[:, idx].astype(jnp.float32)                     # (B, T, NFFT)

    # ---- fused DFT matrices (windows folded in, lane-padded to NBP bins) ----
    nvec = jnp.arange(NFFT, dtype=jnp.float32)
    ang = 2.0 * jnp.pi * nvec[:, None] * k[None, :] / NFFT         # (NFFT, NBINS)
    cos_f = jnp.pad(jnp.cos(ang), ((0, 0), (0, NBP - NBINS)))
    sin_f = jnp.pad(-jnp.sin(ang), ((0, 0), (0, NBP - NBINS)))
    dft_fwd = (win_pad[:, None]
               * jnp.concatenate([cos_f, sin_f], axis=1)).astype(MXU_DTYPE)  # (128, 256)

    wk = jnp.where((k == 0) | (k == NFFT // 2), 1.0, 2.0)
    icos = jnp.pad((wk[:, None] / NFFT) * jnp.cos(ang.T), ((0, NBP - NBINS), (0, 0)))
    isin = jnp.pad(-(wk[:, None] / NFFT) * jnp.sin(ang.T), ((0, NBP - NBINS), (0, 0)))
    idft = (jnp.concatenate([icos, isin], axis=0)
            * win_pad[None, :]).astype(MXU_DTYPE)                  # (256, 128)

    # ---- pad the frame axis to a multiple of the row tile -------------------
    row_tile = _pick_row_tile(T)
    T_pad = ((T + row_tile - 1) // row_tile) * row_tile
    frames = jnp.pad(frames, ((0, 0), (0, T_pad - T), (0, 0)))
    h_rows = jnp.pad(h_rows, ((0, T_pad - T), (0, 0)))

    out_frames = _phaser_pallas(frames, h_rows, dft_fwd, idft, row_tile)
    out_frames = out_frames[:, :T, :]                              # (B, T, NFFT)

    # ---- overlap-add + window-envelope normalisation (torch.istft) ----------
    # TODO(synk): scatter-add is fine at small T; for long signals replace with
    # a hop-aligned segment-sum / sequential fold to avoid XLA scatter serialization.
    out_len = (T - 1) * HOP_SIZE + NFFT
    ola_idx = ((jnp.arange(T) * HOP_SIZE)[:, None]
               + jnp.arange(NFFT)[None, :]).reshape(-1)            # (T*NFFT,)
    y = jnp.zeros((B, out_len), jnp.float32).at[:, ola_idx].add(
        out_frames.reshape(B, T * NFFT))
    wsq = win_pad * win_pad
    env = jnp.zeros((out_len,), jnp.float32).at[ola_idx].add(jnp.tile(wsq, T))
    env = jnp.where(env > 1e-11, env, 1.0)
    y = y / env[None, :]
    return y[:, NFFT // 2: NFFT // 2 + L]


# ------------------------------ parameter init --------------------------------
def make_params(key):
    ks = jax.random.split(key, 4 + 2 * (MLP_LAYERS + 1))
    params = {
        "g1": jnp.float32(1.0),
        "g2": jnp.float32(0.01),
        "phi": jnp.float32(0.5),
        "depth": 0.5 * jax.random.uniform(ks[0], (1,), jnp.float32),
        "bias": 0.1 * jax.random.uniform(ks[1], (1,), jnp.float32),
        # Biquad coefficients (b0,b1,b2) / (a1,a2) — deterministic synthetic values
        "b1": jnp.array([1.0, -0.15, 0.05], jnp.float32),
        "a1": jnp.array([-0.20, 0.10], jnp.float32),
        "b2": jnp.array([1.0, 0.20, 0.10], jnp.float32),
        "a2": jnp.array([-0.10, 0.05], jnp.float32),
    }
    # DampedOscillator: complex pole za (slightly inside unit circle) + amplitude zb
    frame_rate = SAMPLE_RATE / HOP_SIZE
    w0 = 2.0 * math.pi * 2.0 / frame_rate                     # 2 Hz LFO
    r = 0.999
    params["za"] = jnp.array([r * math.cos(w0), r * math.sin(w0)], jnp.float32)
    params["zb"] = jnp.array([1.0, 0.0], jnp.float32)
    # MLP: 1 -> W -> ... -> W -> 1, tanh activations (+ tanh output)
    dims = [1] + [MLP_WIDTH] * MLP_LAYERS + [1]
    Ws, bs = [], []
    for i, (din, dout) in enumerate(zip(dims[:-1], dims[1:])):
        kw = ks[4 + 2 * i]
        kb = ks[5 + 2 * i]
        Ws.append((jax.random.normal(kw, (din, dout), jnp.float32)
                   / math.sqrt(max(din, 1))))
        bs.append(0.1 * jax.random.normal(kb, (dout,), jnp.float32))
    params["Ws"] = Ws
    params["bs"] = bs
    return params


if __name__ == "__main__":
    key = jax.random.PRNGKey(0)
    kx, kp = jax.random.split(key)
    params = make_params(kp)
    x = jax.random.normal(kx, (2, 96), jnp.float32)            # (B=2, L=96)

    fwd = jax.jit(lambda inp: phaser_forward(inp, params))
    y = fwd(x)
    jax.block_until_ready(y)
    assert y.shape == x.shape and y.dtype == jnp.float32
    assert bool(jnp.all(jnp.isfinite(y)))
    print("KERNEL_OK")
</pallas_src>

<mosaic_0001>
module attributes {stable_mosaic.version = 11 : i64} {
  func.func @phaser_freq_kernel(%arg0: i32, %arg1: i32, %arg2: memref<1x128x128xf32, #tpu.memory_space<vmem>>, %arg3: memref<128x256xf32, #tpu.memory_space<vmem>>, %arg4: memref<128x256xbf16, #tpu.memory_space<vmem>>, %arg5: memref<256x128xbf16, #tpu.memory_space<vmem>>, %arg6: memref<1x128x128xf32, #tpu.memory_space<vmem>>) attributes {dimension_semantics = [#tpu.dimension_semantics<parallel>, #tpu.dimension_semantics<parallel>], iteration_bounds = array<i64: 1, 2>, scalar_prefetch = 0 : i64, scratch_operands = 0 : i64, tpu.core_type = #tpu.core_type<tc>, window_params = [{transform_indices = @transform_0, window_bounds = array<i64: 1, 128, 128>}, {transform_indices = @transform_1, window_bounds = array<i64: 128, 256>}, {pipeline_mode = #tpu.pipeline_mode<synchronous>, transform_indices = @transform_2, window_bounds = array<i64: 128, 256>}, {pipeline_mode = #tpu.pipeline_mode<synchronous>, transform_indices = @transform_3, window_bounds = array<i64: 256, 128>}, {transform_indices = @transform_4, window_bounds = array<i64: 1, 128, 128>}]} {
    %c0 = arith.constant 0 : index
    %c0_0 = arith.constant 0 : index
    %c0_1 = arith.constant 0 : index
    %0 = vector.load %arg2[%c0, %c0_0, %c0_1] : memref<1x128x128xf32, #tpu.memory_space<vmem>>, vector<1x128x128xf32>
    %1 = vector.shape_cast %0 : vector<1x128x128xf32> to vector<128x128xf32>
    %2 = arith.truncf %1 : vector<128x128xf32> to vector<128x128xbf16>
    %c0_2 = arith.constant 0 : index
    %c0_3 = arith.constant 0 : index
    %3 = vector.load %arg4[%c0_2, %c0_3] : memref<128x256xbf16, #tpu.memory_space<vmem>>, vector<128x256xbf16>
    %cst = arith.constant dense<0.000000e+00> : vector<128x256xf32>
    %4 = tpu.matmul %2, %3, %cst {dimension_numbers = #tpu.dot_dimension_numbers<[1], [0], [0], [1], [0, 0, 1, 1], [], []>} : vector<128x128xbf16>, vector<128x256xbf16>, vector<128x256xf32> -> vector<128x256xf32>
    %5 = vector.extract_strided_slice %4 {offsets = [0, 0], sizes = [128, 128], strides = [1, 1]} : vector<128x256xf32> to vector<128x128xf32>
    %6 = vector.extract_strided_slice %4 {offsets = [0, 128], sizes = [128, 128], strides = [1, 1]} : vector<128x256xf32> to vector<128x128xf32>
    %c0_4 = arith.constant 0 : index
    %c0_5 = arith.constant 0 : index
    %7 = vector.load %arg3[%c0_4, %c0_5] : memref<128x256xf32, #tpu.memory_space<vmem>>, vector<128x128xf32>
    %c0_6 = arith.constant 0 : index
    %c128 = arith.constant 128 : index
    %8 = vector.load %arg3[%c0_6, %c128] : memref<128x256xf32, #tpu.memory_space<vmem>>, vector<128x128xf32>
    %9 = arith.mulf %5, %7 : vector<128x128xf32>
    %10 = arith.mulf %6, %8 : vector<128x128xf32>
    %11 = arith.subf %9, %10 : vector<128x128xf32>
    %12 = arith.mulf %5, %8 : vector<128x128xf32>
    %13 = arith.mulf %6, %7 : vector<128x128xf32>
    %14 = arith.addf %12, %13 : vector<128x128xf32>
    %15 = tpu.concatenate %11, %14 in 1 : vector<128x128xf32>, vector<128x128xf32> -> vector<128x256xf32>
    %16 = arith.truncf %15 : vector<128x256xf32> to vector<128x256xbf16>
    %c0_7 = arith.constant 0 : index
    %c0_8 = arith.constant 0 : index
    %17 = vector.load %arg5[%c0_7, %c0_8] : memref<256x128xbf16, #tpu.memory_space<vmem>>, vector<256x128xbf16>
    %cst_9 = arith.constant dense<0.000000e+00> : vector<128x128xf32>
    %18 = tpu.matmul %16, %17, %cst_9 {dimension_numbers = #tpu.dot_dimension_numbers<[1], [0], [0], [1], [0, 0, 1, 1], [], []>} : vector<128x256xbf16>, vector<256x128xbf16>, vector<128x128xf32> -> vector<128x128xf32>
    %c0_10 = arith.constant 0 : index
    %c0_11 = arith.constant 0 : index
    %c0_12 = arith.constant 0 : index
    %19 = vector.load %arg6[%c0_10, %c0_11, %c0_12] : memref<1x128x128xf32, #tpu.memory_space<vmem>>, vector<1x128x128xf32>
    %20 = vector.shape_cast %19 : vector<1x128x128xf32> to vector<128x128xf32>
    %21 = vector.shape_cast %18 : vector<128x128xf32> to vector<1x128x128xf32>
    tpu.vector_store %arg6[%c0_10, %c0_11, %c0_12], %21 {strides = array<i32>} : memref<1x128x128xf32, #tpu.memory_space<vmem>>, vector<1x128x128xf32>,
    return
  }
  func.func @transform_0(%arg0: i32, %arg1: i32) -> (i32, i32, i32) {
    %c0_i32 = arith.constant 0 : i32
    %c0_i32_0 = arith.constant 0 : i32
    return %arg1, %arg0, %c0_i32 : i32, i32, i32
  }
  func.func @transform_1(%arg0: i32, %arg1: i32) -> (i32, i32) {
    %c0_i32 = arith.constant 0 : i32
    %c0_i32_0 = arith.constant 0 : i32
    return %arg0, %c0_i32 : i32, i32
  }
  func.func @transform_2(%arg0: i32, %arg1: i32) -> (i32, i32) {
    %c0_i32 = arith.constant 0 : i32
    %c0_i32_0 = arith.constant 0 : i32
    %c0_i32_1 = arith.constant 0 : i32
    return %c0_i32, %c0_i32_0 : i32, i32
  }
  func.func @transform_3(%arg0: i32, %arg1: i32) -> (i32, i32) {
    %c0_i32 = arith.constant 0 : i32
    %c0_i32_0 = arith.constant 0 : i32
    %c0_i32_1 = arith.constant 0 : i32
    return %c0_i32, %c0_i32_0 : i32, i32
  }
  func.func @transform_4(%arg0: i32, %arg1: i32) -> (i32, i32, i32) {
    %c0_i32 = arith.constant 0 : i32
    %c0_i32_0 = arith.constant 0 : i32
    return %arg1, %arg0, %c0_i32 : i32, i32, i32
  }
}

</mosaic_0001>

<llo_original>
// kernel: _lambda_.1
$region0: #{_lambda_.1}
  #allocation0 [shape = 'u32[]', space=smem, size = 0x4, offset = 0x4, fixed_abs, tag = 'smem constant byte address 0x4 - core index']
  #allocation1 [shape = 'u32[72,128]{1,0:T(1,128)}', space=vmem, size = 0x9000, scoped, tag = 'internal scratch']
  %s0 = inlined_call_operand.vmem [shape: f32[2,128,128], index: 0, kind: input, shape index: {}]
  %s1 = inlined_call_operand.vmem [shape: f32[128,256], index: 1, kind: input, shape index: {}]
  %s2 = inlined_call_operand.vmem [shape: bf16[128,256], index: 2, kind: input, shape index: {}]
  %s3 = inlined_call_operand.vmem [shape: bf16[256,128], index: 3, kind: input, shape index: {}]
  %s4 = inlined_call_operand.vmem [shape: f32[2,128,128], index: 4, kind: output, shape index: {}]
  %s5 = sld [smem:[#allocation0]]
  $region49: #{_lambda_.1} parent=0
    _
  %s7 = ssub.s32 1, %s5
  %s8 = scalar_select 0, %s7, %s5
  loop: start=0, step=1, limit=4
  $region2: #{_lambda_.1} parent=0 // loop_pre_header
    _
  $region3: #{_lambda_.1} parent=0 // loop_header
    %s10 = sphi 0, %s14
    %p11 = scmp.ge.s32.totalorder %s10, 4
    %s17 = sphi 0, %s29
    %s18 = sphi 0, %s25
    %s19 = sphi 0, %s17
    %s20 = sphi 0, %s18
    %s21 = sphi 0, %s19
    %s22 = sphi 0, %s20
    %s34 = sphi 0, %s36
    %s37 = sphi 0, %s34
    %s38 = sphi 0, %s37
    %s54 = sphi 0, %s38
    %s60 = sphi 0, %s62
    %s63 = sphi 0, %s60
    %s64 = sphi 0, %s63
    %s80 = sphi 0, %s64
    %s84 = sphi 0, %s84
    %s86 = sphi 0, %s84
    %s87 = sphi 0, %s86
    %s101 = sphi 0, %s87
    %s105 = sphi 0, %s105
    %s107 = sphi 0, %s105
    %s108 = sphi 0, %s107
    %s122 = sphi 0, %s108
    %s130 = sphi 0, %s132
    %s133 = sphi 0, %s130
    %s134 = sphi 0, %s133
    %s150 = sphi 0, %s134
  $region4: #{_lambda_.1} parent=0 // loop_header_branch
    %13 = sbr.rel (%p11) target = $region8
  $region5: #{_lambda_.1} parent=0 // loop_body
    %s15 = ssub.s32 %s10, 1
    %s16 = ssub.s32 %s10, 2
    %s23 = sadd.s32 1, %s18
    %p24 = scmp.ge.s32.totalorder %s23, 2
    %s25 = scalar_select %p24, 0, %s23
    %s26 = sadd.s32 1, %s17
    %s27 = scalar_select %p24, %s26, %s17
    %p28 = scmp.ge.s32.totalorder %s27, 1
    %s29 = scalar_select %p28, 0, %s27
    %s30 = ssub.s32 %s18, %s25
    %s31 = ssub.s32 %s17, %s29
    %s32 = sor.u32 %s30, %s31
    %p33 = scmp.eq.s32.totalorder %s32, 0
    %s35 = sadd.s32 %s34, 1
    %s36 = scalar_select %p33, %s34, %s35
    %p39 = pneg %p33
    %p40 = scmp.eq.s32.totalorder %s10, 1
    %p41 = por %p39, %p40
    %p42 = scmp.ne.s32.totalorder %s34, %s37
    %p43 = scmp.eq.s32.totalorder %s10, 0
    %p44 = por %p42, %p43
    %p45 = scmp.ne.s32.totalorder %s34, %s37
    %p46 = scmp.eq.s32.totalorder %s15, 1
    %p47 = por %p45, %p46
    %p48 = scmp.ne.s32.totalorder %s37, %s38
    %p49 = scmp.eq.s32.totalorder %s15, 0
    %p50 = por %p48, %p49
    %p51 = scmp.ne.s32.totalorder %s37, %s38
    %p52 = scmp.eq.s32.totalorder %s16, 1
    %p53 = por %p51, %p52
    %p55 = scmp.ne.s32.totalorder %s38, %s54
    %p56 = scmp.eq.s32.totalorder %s16, 0
    %p57 = por %p55, %p56
    %s58 = ssub.s32 %s17, %s29
    %p59 = scmp.eq.s32.totalorder %s58, 0
    %s61 = sadd.s32 %s60, 1
    %s62 = scalar_select %p59, %s60, %s61
    %p65 = pneg %p59
    %p66 = scmp.eq.s32.totalorder %s10, 1
    %p67 = por %p65, %p66
    %p68 = scmp.ne.s32.totalorder %s60, %s63
    %p69 = scmp.eq.s32.totalorder %s10, 0
    %p70 = por %p68, %p69
    %p71 = scmp.ne.s32.totalorder %s60, %s63
    %p72 = scmp.eq.s32.totalorder %s15, 1
    %p73 = por %p71, %p72
    %p74 = scmp.ne.s32.totalorder %s63, %s64
    %p75 = scmp.eq.s32.totalorder %s15, 0
    %p76 = por %p74, %p75
    %p77 = scmp.ne.s32.totalorder %s63, %s64
    %p78 = scmp.eq.s32.totalorder %s16, 1
    %p79 = por %p77, %p78
    %p81 = scmp.ne.s32.totalorder %s64, %s80
    %p82 = scmp.eq.s32.totalorder %s16, 0
    %p83 = por %p81, %p82
    %s85 = sadd.s32 %s84, 1
    %p88 = scmp.eq.s32.totalorder %s10, 1
    %p89 = scmp.ne.s32.totalorder %s84, %s86
    %p90 = scmp.eq.s32.totalorder %s10, 0
    %p91 = por %p89, %p90
    %p92 = scmp.ne.s32.totalorder %s84, %s86
    %p93 = scmp.eq.s32.totalorder %s15, 1
    %p94 = por %p92, %p93
    %p95 = scmp.ne.s32.totalorder %s86, %s87
    %p96 = scmp.eq.s32.totalorder %s15, 0
    %p97 = por %p95, %p96
    %p98 = scmp.ne.s32.totalorder %s86, %s87
    %p99 = scmp.eq.s32.totalorder %s16, 1
    %p100 = por %p98, %p99
    %p102 = scmp.ne.s32.totalorder %s87, %s101
    %p103 = scmp.eq.s32.totalorder %s16, 0
    %p104 = por %p102, %p103
    %s106 = sadd.s32 %s105, 1
    %p109 = scmp.eq.s32.totalorder %s10, 1
    %p110 = scmp.ne.s32.totalorder %s105, %s107
    %p111 = scmp.eq.s32.totalorder %s10, 0
    %p112 = por %p110, %p111
    %p113 = scmp.ne.s32.totalorder %s105, %s107
    %p114 = scmp.eq.s32.totalorder %s15, 1
    %p115 = por %p113, %p114
    %p116 = scmp.ne.s32.totalorder %s107, %s108
    %p117 = scmp.eq.s32.totalorder %s15, 0
    %p118 = por %p116, %p117
    %p119 = scmp.ne.s32.totalorder %s107, %s108
    %p120 = scmp.eq.s32.totalorder %s16, 1
    %p121 = por %p119, %p120
    %p123 = scmp.ne.s32.totalorder %s108, %s122
    %p124 = scmp.eq.s32.totalorder %s16, 0
    %p125 = por %p123, %p124
    %s126 = ssub.s32 %s18, %s25
    %s127 = ssub.s32 %s17, %s29
    %s128 = sor.u32 %s126, %s127
    %p129 = scmp.eq.s32.totalorder %s128, 0
    %s131 = sadd.s32 %s130, 1
    %s132 = scalar_select %p129, %s130, %s131
    %p135 = pneg %p129
    %p136 = scmp.eq.s32.totalorder %s10, 1
    %p137 = por %p135, %p136
    %p138 = scmp.ne.s32.totalorder %s130, %s133
    %p139 = scmp.eq.s32.totalorder %s10, 0
    %p140 = por %p138, %p139
    %p141 = scmp.ne.s32.totalorder %s130, %s133
    %p142 = scmp.eq.s32.totalorder %s15, 1
    %p143 = por %p141, %p142
    %p144 = scmp.ne.s32.totalorder %s133, %s134
    %p145 = scmp.eq.s32.totalorder %s15, 0
    %p146 = por %p144, %p145
    %p147 = scmp.ne.s32.totalorder %s133, %s134
    %p148 = scmp.eq.s32.totalorder %s16, 1
    %p149 = por %p147, %p148
    %p151 = scmp.ne.s32.totalorder %s134, %s150
    %p152 = scmp.eq.s32.totalorder %s16, 0
    %p153 = por %p151, %p152
    %p154 = scmp.le.s32.totalorder 1, %s10
    %p155 = scmp.lt.s32.totalorder %s10, 3
    %p156 = pnand %p154, %p155
    %p157 = pneg %p156
    // Predicated region
    $region9: #{_lambda_.1} parent=5 // pred_check
      _
    $region10: #{_lambda_.1} parent=5 // pred_check_branch
      %159 = sbr.rel (%p156) target = $region12
    $region11: #{_lambda_.1} parent=5 // pred_region
      %s160 = ssub.s32 %s10, 1
      // Predicated region
      $region13: #{_lambda_.1} parent=11 // pred_check
        %p161 = pneg %p76
      $region14: #{_lambda_.1} parent=11 // pred_check_branch
        %163 = sbr.rel (%p161) target = $region16
      $region15: #{_lambda_.1} parent=11 // pred_region
        %s164 = smul.u32 16, %s19
        %p165 = scmp.lt.s32.totalorder %s164, 15
        %s166 = scalar_select %p165, %s164, 15
        %s167 = smul.addr %s166, 2
        %s168 = smul.addr %s167, 8
        %s169 = scalar_lea.vmem %s1, %s168
        %s170 = smul.u32 16, %s19
      $region16: #{_lambda_.1} parent=11 // pred_fallthru
        _
      // Predicated region
      $region17: #{_lambda_.1} parent=11 // pred_check
        %p171 = pneg %p97
      $region18: #{_lambda_.1} parent=11 // pred_check_branch
        %173 = sbr.rel (%p171) target = $region20
      $region19: #{_lambda_.1} parent=11 // pred_region
        _
      $region20: #{_lambda_.1} parent=11 // pred_fallthru
        _
      // Predicated region
      $region21: #{_lambda_.1} parent=11 // pred_check
        %p174 = pneg %p118
      $region22: #{_lambda_.1} parent=11 // pred_check_branch
        %176 = sbr.rel (%p174) target = $region24
      $region23: #{_lambda_.1} parent=11 // pred_region
        _
      $region24: #{_lambda_.1} parent=11 // pred_fallthru
        _
    $region12: #{_lambda_.1} parent=5 // pred_fallthru
      _
    %p177 = scmp.lt.s32.totalorder %s10, 2
    // Predicated region
    $region25: #{_lambda_.1} parent=5 // pred_check
      %p178 = pneg %p177
    $region26: #{_lambda_.1} parent=5 // pred_check_branch
      %180 = sbr.rel (%p178) target = $region28
    $region27: #{_lambda_.1} parent=5 // pred_region
      // Predicated region
      $region29: #{_lambda_.1} parent=27 // pred_check
        %p181 = pneg %p44
      $region30: #{_lambda_.1} parent=27 // pred_check_branch
        %183 = sbr.rel (%p181) target = $region32
      $region31: #{_lambda_.1} parent=27 // pred_region
        %s184 = smul.u32 16, %s17
        %p185 = scmp.lt.s32.totalorder %s18, 1
        %s186 = scalar_select %p185, %s18, 1
        %p187 = scmp.lt.s32.totalorder %s184, 15
        %s188 = scalar_select %p187, %s184, 15
        %s189 = smul.addr %s186, 16
        %s190 = sadd.s32 %s188, %s189
        %s191 = smul.addr %s190, 8
        %s192 = scalar_lea.vmem %s0, %s191
        %s193 = smul.u32 16, %s17
      $region32: #{_lambda_.1} parent=27 // pred_fallthru
        _
    $region28: #{_lambda_.1} parent=5 // pred_fallthru
      _
    %p194 = scmp.le.s32.totalorder 1, %s10
    %p195 = scmp.lt.s32.totalorder %s10, 3
    %p196 = pnand %p194, %p195
    %p197 = pneg %p196
    // Predicated region
    $region33: #{_lambda_.1} parent=5 // pred_check
      _
    $region34: #{_lambda_.1} parent=5 // pred_check_branch
      %199 = sbr.rel (%p196) target = $region36
    $region35: #{_lambda_.1} parent=5 // pred_region
      %s200 = ssub.s32 %s10, 1
      %s201 = smul.u32 16, %s19
      %p202 = scmp.lt.s32.totalorder %s20, 1
      %s203 = scalar_select %p202, %s20, 1
      %p204 = scmp.lt.s32.totalorder %s201, 15
      %s205 = scalar_select %p204, %s201, 15
      %s206 = smul.addr %s203, 16
      %s207 = sadd.s32 %s205, %s206
      %s208 = smul.addr %s207, 8
      %s209 = scalar_lea.vmem %s0, %s208
      %p210 = pneg %p50
      %p211 = pneg %p47
      %s212 = smul.u32 16, %s19
      %p213 = scmp.lt.s32.totalorder %s212, 15
      %s214 = scalar_select %p213, %s212, 15
      %s215 = smul.addr %s214, 2
      %s216 = smul.addr %s215, 8
      %s217 = scalar_lea.vmem %s1, %s216
      %p218 = pneg %p76
      %p219 = pneg %p73
      %p220 = pneg %p97
      %p221 = pneg %p94
      %p222 = pneg %p118
      %p223 = pneg %p115
      %p224 = pneg %p146
      %p225 = pneg %p143
      %s226 = smul.u32 16, %s19
      %p227 = scmp.lt.s32.totalorder %s20, 1
      %s228 = scalar_select %p227, %s20, 1
      %p229 = scmp.lt.s32.totalorder %s226, 15
      %s230 = scalar_select %p229, %s226, 15
      %s231 = smul.addr %s228, 16
      %s232 = sadd.s32 %s230, %s231
      %s233 = smul.addr %s232, 8
      %s234 = scalar_lea.vmem %s4, %s233
      %s235 = smul.u32 16, %s19
      %p236 = scmp.lt.s32.totalorder %s20, 1
      %s237 = scalar_select %p236, %s20, 1
      %p238 = scmp.lt.s32.totalorder %s235, 15
      %s239 = scalar_select %p238, %s235, 15
      %s240 = smul.addr %s237, 16
      %s241 = sadd.s32 %s239, %s240
      %s242 = smul.addr %s241, 8
      %s243 = scalar_lea.vmem %s0, %s242
      %s244 = smul.u32 16, %s19
      %s245 = smul.u32 16, %s19
      %p246 = scmp.lt.s32.totalorder %s245, 15
      %s247 = scalar_select %p246, %s245, 15
      %s248 = smul.addr %s247, 2
      %s249 = smul.addr %s248, 8
      %s250 = scalar_lea.vmem %s1, %s249
      %s251 = smul.u32 16, %s19
      %s252 = smul.u32 16, %s19
      %p253 = scmp.lt.s32.totalorder %s20, 1
      %s254 = scalar_select %p253, %s20, 1
      %p255 = scmp.lt.s32.totalorder %s252, 15
      %s256 = scalar_select %p255, %s252, 15
      %s257 = smul.addr %s254, 16
      %s258 = sadd.s32 %s256, %s257
      %s259 = smul.addr %s258, 8
      %s260 = scalar_lea.vmem %s4, %s259
      %s261 = smul.u32 16, %s19
      %v262 = vld [vmem:[%s243] sm:$0xff]
      %v263 = vld [vmem:[%s243 + $0x8] sm:$0xff]
      %v264 = vld [vmem:[%s243 + $0x10] sm:$0xff]
      %v265 = vld [vmem:[%s243 + $0x18] sm:$0xff]
      %v266 = vld [vmem:[%s243 + $0x20] sm:$0xff]
      %v267 = vld [vmem:[%s243 + $0x28] sm:$0xff]
      %v268 = vld [vmem:[%s243 + $0x30] sm:$0xff]
      %v269 = vld [vmem:[%s243 + $0x38] sm:$0xff]
      %v270 = vld [vmem:[%s243 + $0x40] sm:$0xff]
      %v271 = vld [vmem:[%s243 + $0x48] sm:$0xff]
      %v272 = vld [vmem:[%s243 + $0x50] sm:$0xff]
      %v273 = vld [vmem:[%s243 + $0x58] sm:$0xff]
      %v274 = vld [vmem:[%s243 + $0x60] sm:$0xff]
      %v275 = vld [vmem:[%s243 + $0x68] sm:$0xff]
      %v276 = vld [vmem:[%s243 + $0x70] sm:$0xff]
      %v277 = vld [vmem:[%s243 + $0x78] sm:$0xff]
      %v278 = vpack.c.bf16 %v263, %v262
      %v279 = vpack.c.bf16 %v265, %v264
      %v280 = vpack.c.bf16 %v267, %v266
      %v281 = vpack.c.bf16 %v269, %v268
      %v282 = vpack.c.bf16 %v271, %v270
      %v283 = vpack.c.bf16 %v273, %v272
      %v284 = vpack.c.bf16 %v275, %v274
      %v285 = vpack.c.bf16 %v277, %v276
      %v286 = vld [vmem:[%s2] sm:$0xff]
      %v287 = vld [vmem:[%s2 + $0x8] sm:$0xff]
      %v288 = vld [vmem:[%s2 + $0x10] sm:$0xff]
      %v289 = vld [vmem:[%s2 + $0x18] sm:$0xff]
      %v290 = vld [vmem:[%s2 + $0x20] sm:$0xff]
      %v291 = vld [vmem:[%s2 + $0x28] sm:$0xff]
      %v292 = vld [vmem:[%s2 + $0x30] sm:$0xff]
      %v293 = vld [vmem:[%s2 + $0x38] sm:$0xff]
      %v294 = vld [vmem:[%s2 + $0x40] sm:$0xff]
      %v295 = vld [vmem:[%s2 + $0x48] sm:$0xff]
      %v296 = vld [vmem:[%s2 + $0x50] sm:$0xff]
      %v297 = vld [vmem:[%s2 + $0x58] sm:$0xff]
      %v298 = vld [vmem:[%s2 + $0x60] sm:$0xff]
      %v299 = vld [vmem:[%s2 + $0x68] sm:$0xff]
      %v300 = vld [vmem:[%s2 + $0x70] sm:$0xff]
      %v301 = vld [vmem:[%s2 + $0x78] sm:$0xff]
      %v318 = vunpack.c.l.b16 %v286
      %v319 = vunpack.c.h.b16 %v286
      %v320 = vunpack.c.l.b16 %v287
      %v321 = vunpack.c.h.b16 %v287
      %v322 = vunpack.c.l.b16 %v288
      %v323 = vunpack.c.h.b16 %v288
      %v324 = vunpack.c.l.b16 %v289
      %v325 = vunpack.c.h.b16 %v289
      %v326 = vunpack.c.l.b16 %v290
      %v327 = vunpack.c.h.b16 %v290
      %v328 = vunpack.c.l.b16 %v291
      %v329 = vunpack.c.h.b16 %v291
      %v330 = vunpack.c.l.b16 %v292
      %v331 = vunpack.c.h.b16 %v292
      %v332 = vunpack.c.l.b16 %v293
      %v333 = vunpack.c.h.b16 %v293
      %v334 = vunpack.c.l.b16 %v294
      %v335 = vunpack.c.h.b16 %v294
      %v336 = vunpack.c.l.b16 %v295
      %v337 = vunpack.c.h.b16 %v295
      %v338 = vunpack.c.l.b16 %v296
      %v339 = vunpack.c.h.b16 %v296
      %v340 = vunpack.c.l.b16 %v297
      %v341 = vunpack.c.h.b16 %v297
      %v342 = vunpack.c.l.b16 %v298
      %v343 = vunpack.c.h.b16 %v298
      %v344 = vunpack.c.l.b16 %v299
      %v345 = vunpack.c.h.b16 %v299
      %v346 = vunpack.c.l.b16 %v300
      %v347 = vunpack.c.h.b16 %v300
      %v348 = vunpack.c.l.b16 %v301
      %v349 = vunpack.c.h.b16 %v301
      %v350 = vpack.c.b16 %v320, %v318
      %v351 = vpack.c.b16 %v321, %v319
      %v352 = vpack.c.b16 %v324, %v322
      %v353 = vpack.c.b16 %v325, %v323
      %v354 = vpack.c.b16 %v328, %v326
      %v355 = vpack.c.b16 %v329, %v327
      %v356 = vpack.c.b16 %v332, %v330
      %v357 = vpack.c.b16 %v333, %v331
      %v358 = vpack.c.b16 %v336, %v334
      %v359 = vpack.c.b16 %v337, %v335
      %v360 = vpack.c.b16 %v340, %v338
      %v361 = vpack.c.b16 %v341, %v339
      %v362 = vpack.c.b16 %v344, %v342
      %v363 = vpack.c.b16 %v345, %v343
      %v364 = vpack.c.b16 %v348, %v346
      %v365 = vpack.c.b16 %v349, %v347
      %382 = vmatpush.bf16.msra.mxu0 %v364
      %383 = vmatpush.bf16.msra.mxu0 %v362
      %384 = vmatpush.bf16.msra.mxu0 %v360
      %385 = vmatpush.bf16.msra.mxu0 %v358
      %386 = vmatpush.bf16.msra.mxu0 %v356
      %387 = vmatpush.bf16.msra.mxu0 %v354
      %388 = vmatpush.bf16.msra.mxu0 %v352
      %389 = vmatpush.bf16.msra.mxu0 %v350
      %390 = vmatmul.bf16.gmra.mxu0 %v278
      %v391 = vpop.f32.mrf.mxu0
      %v392 = vadd.f32 0.0, %v391
      %v393 = vpop.f32.mrf.mxu0
      %v394 = vadd.f32 0.0, %v393
      %395 = vmatmul.bf16.gmra.mxu0 %v279
      %v396 = vpop.f32.mrf.mxu0
      %v397 = vadd.f32 0.0, %v396
      %v398 = vpop.f32.mrf.mxu0
      %v399 = vadd.f32 0.0, %v398
      %400 = vmatmul.bf16.gmra.mxu0 %v280
      %v401 = vpop.f32.mrf.mxu0
      %v402 = vadd.f32 0.0, %v401
      %v403 = vpop.f32.mrf.mxu0
      %v404 = vadd.f32 0.0, %v403
      %405 = vmatmul.bf16.gmra.mxu0 %v281
      %v406 = vpop.f32.mrf.mxu0
      %v407 = vadd.f32 0.0, %v406
      %v408 = vpop.f32.mrf.mxu0
      %v409 = vadd.f32 0.0, %v408
      %410 = vmatmul.bf16.gmra.mxu0 %v282
      %v411 = vpop.f32.mrf.mxu0
      %v412 = vadd.f32 0.0, %v411
      %v413 = vpop.f32.mrf.mxu0
      %v414 = vadd.f32 0.0, %v413
      %415 = vmatmul.bf16.gmra.mxu0 %v283
      %v416 = vpop.f32.mrf.mxu0
      %v417 = vadd.f32 0.0, %v416
      %v418 = vpop.f32.mrf.mxu0
      %v419 = vadd.f32 0.0, %v418
      %420 = vmatmul.bf16.gmra.mxu0 %v284
      %v421 = vpop.f32.mrf.mxu0
      %v422 = vadd.f32 0.0, %v421
      %v423 = vpop.f32.mrf.mxu0
      %v424 = vadd.f32 0.0, %v423
      %425 = vmatmul.bf16.gmra.mxu0 %v285
      %v426 = vpop.f32.mrf.mxu0
      %v427 = vadd.f32 0.0, %v426
      %v428 = vpop.f32.mrf.mxu0
      %v429 = vadd.f32 0.0, %v428
      %430 = vdwg.mxu0
      %431 = vmatpush.bf16.msra.mxu0 %v365
      %432 = vmatpush.bf16.msra.mxu0 %v363
      %433 = vmatpush.bf16.msra.mxu0 %v361
      %434 = vmatpush.bf16.msra.mxu0 %v359
      %435 = vmatpush.bf16.msra.mxu0 %v357
      %436 = vmatpush.bf16.msra.mxu0 %v355
      %437 = vmatpush.bf16.msra.mxu0 %v353
      %438 = vmatpush.bf16.msra.mxu0 %v351
      %439 = vmatmul.bf16.gmra.mxu0 %v278
      %v440 = vpop.f32.mrf.mxu0
      %v441 = vadd.f32 0.0, %v440
      %v442 = vpop.f32.mrf.mxu0
      %v443 = vadd.f32 0.0, %v442
      %444 = vmatmul.bf16.gmra.mxu0 %v279
      %v445 = vpop.f32.mrf.mxu0
      %v446 = vadd.f32 0.0, %v445
      %v447 = vpop.f32.mrf.mxu0
      %v448 = vadd.f32 0.0, %v447
      %449 = vmatmul.bf16.gmra.mxu0 %v280
      %v450 = vpop.f32.mrf.mxu0
      %v451 = vadd.f32 0.0, %v450
      %v452 = vpop.f32.mrf.mxu0
      %v453 = vadd.f32 0.0, %v452
      %454 = vmatmul.bf16.gmra.mxu0 %v281
      %v455 = vpop.f32.mrf.mxu0
      %v456 = vadd.f32 0.0, %v455
      %v457 = vpop.f32.mrf.mxu0
      %v458 = vadd.f32 0.0, %v457
      %459 = vmatmul.bf16.gmra.mxu0 %v282
      %v460 = vpop.f32.mrf.mxu0
      %v461 = vadd.f32 0.0, %v460
      %v462 = vpop.f32.mrf.mxu0
      %v463 = vadd.f32 0.0, %v462
      %464 = vmatmul.bf16.gmra.mxu0 %v283
      %v465 = vpop.f32.mrf.mxu0
      %v466 = vadd.f32 0.0, %v465
      %v467 = vpop.f32.mrf.mxu0
      %v468 = vadd.f32 0.0, %v467
      %469 = vmatmul.bf16.gmra.mxu0 %v284
      %v470 = vpop.f32.mrf.mxu0
      %v471 = vadd.f32 0.0, %v470
      %v472 = vpop.f32.mrf.mxu0
      %v473 = vadd.f32 0.0, %v472
      %474 = vmatmul.bf16.gmra.mxu0 %v285
      %v475 = vpop.f32.mrf.mxu0
      %v476 = vadd.f32 0.0, %v475
      %v477 = vpop.f32.mrf.mxu0
      %v478 = vadd.f32 0.0, %v477
      %479 = vdwg.mxu0
      %v480 = vld [vmem:[%s250] sm:$0xff]
      %v481 = vld [vmem:[%s250 + $0x10] sm:$0xff]
      %v482 = vld [vmem:[%s250 + $0x20] sm:$0xff]
      %v483 = vld [vmem:[%s250 + $0x30] sm:$0xff]
      %v484 = vld [vmem:[%s250 + $0x40] sm:$0xff]
      %v485 = vld [vmem:[%s250 + $0x50] sm:$0xff]
      %v486 = vld [vmem:[%s250 + $0x60] sm:$0xff]
      %v487 = vld [vmem:[%s250 + $0x70] sm:$0xff]
      %v488 = vld [vmem:[%s250 + $0x80] sm:$0xff]
      %v489 = vld [vmem:[%s250 + $0x90] sm:$0xff]
      %v490 = vld [vmem:[%s250 + $0xa0] sm:$0xff]
      %v491 = vld [vmem:[%s250 + $0xb0] sm:$0xff]
      %v492 = vld [vmem:[%s250 + $0xc0] sm:$0xff]
      %v493 = vld [vmem:[%s250 + $0xd0] sm:$0xff]
      %v494 = vld [vmem:[%s250 + $0xe0] sm:$0xff]
      %v495 = vld [vmem:[%s250 + $0xf0] sm:$0xff]
      %v496 = vld [vmem:[%s250 + $0x8] sm:$0xff]
      %v497 = vld [vmem:[%s250 + $0x18] sm:$0xff]
      %v498 = vld [vmem:[%s250 + $0x28] sm:$0xff]
      %v499 = vld [vmem:[%s250 + $0x38] sm:$0xff]
      %v500 = vld [vmem:[%s250 + $0x48] sm:$0xff]
      %v501 = vld [vmem:[%s250 + $0x58] sm:$0xff]
      %v502 = vld [vmem:[%s250 + $0x68] sm:$0xff]
      %v503 = vld [vmem:[%s250 + $0x78] sm:$0xff]
      %v504 = vld [vmem:[%s250 + $0x88] sm:$0xff]
      %v505 = vld [vmem:[%s250 + $0x98] sm:$0xff]
      %v506 = vld [vmem:[%s250 + $0xa8] sm:$0xff]
      %v507 = vld [vmem:[%s250 + $0xb8] sm:$0xff]
      %v508 = vld [vmem:[%s250 + $0xc8] sm:$0xff]
      %v509 = vld [vmem:[%s250 + $0xd8] sm:$0xff]
      %v510 = vld [vmem:[%s250 + $0xe8] sm:$0xff]
      %v511 = vld [vmem:[%s250 + $0xf8] sm:$0xff]
      %v512 = vmul.f32 %v392, %v480
      %v513 = vmul.f32 %v394, %v481
      %v514 = vmul.f32 %v397, %v482
      %v515 = vmul.f32 %v399, %v483
      %v516 = vmul.f32 %v402, %v484
      %v517 = vmul.f32 %v404, %v485
      %v518 = vmul.f32 %v407, %v486
      %v519 = vmul.f32 %v409, %v487
      %v520 = vmul.f32 %v412, %v488
      %v521 = vmul.f32 %v414, %v489
      %v522 = vmul.f32 %v417, %v490
      %v523 = vmul.f32 %v419, %v491
      %v524 = vmul.f32 %v422, %v492
      %v525 = vmul.f32 %v424, %v493
      %v526 = vmul.f32 %v427, %v494
      %v527 = vmul.f32 %v429, %v495
      %v528 = vmul.f32 %v441, %v496
      %v529 = vmul.f32 %v443, %v497
      %v530 = vmul.f32 %v446, %v498
      %v531 = vmul.f32 %v448, %v499
      %v532 = vmul.f32 %v451, %v500
      %v533 = vmul.f32 %v453, %v501
      %v534 = vmul.f32 %v456, %v502
      %v535 = vmul.f32 %v458, %v503
      %v536 = vmul.f32 %v461, %v504
      %v537 = vmul.f32 %v463, %v505
      %v538 = vmul.f32 %v466, %v506
      %v539 = vmul.f32 %v468, %v507
      %v540 = vmul.f32 %v471, %v508
      %v541 = vmul.f32 %v473, %v509
      %v542 = vmul.f32 %v476, %v510
      %v543 = vmul.f32 %v478, %v511
      %v544 = vsub.f32 %v512, %v528
      %v545 = vsub.f32 %v513, %v529
      %v546 = vsub.f32 %v514, %v530
      %v547 = vsub.f32 %v515, %v531
      %v548 = vsub.f32 %v516, %v532
      %v549 = vsub.f32 %v517, %v533
      %v550 = vsub.f32 %v518, %v534
      %v551 = vsub.f32 %v519, %v535
      %v552 = vsub.f32 %v520, %v536
      %v553 = vsub.f32 %v521, %v537
      %v554 = vsub.f32 %v522, %v538
      %v555 = vsub.f32 %v523, %v539
      %v556 = vsub.f32 %v524, %v540
      %v557 = vsub.f32 %v525, %v541
      %v558 = vsub.f32 %v526, %v542
      %v559 = vsub.f32 %v527, %v543
      %v560 = vmul.f32 %v392, %v496
      %v561 = vmul.f32 %v394, %v497
      %v562 = vmul.f32 %v397, %v498
      %v563 = vmul.f32 %v399, %v499
      %v564 = vmul.f32 %v402, %v500
      %v565 = vmul.f32 %v404, %v501
      %v566 = vmul.f32 %v407, %v502
      %v567 = vmul.f32 %v409, %v503
      %v568 = vmul.f32 %v412, %v504
      %v569 = vmul.f32 %v414, %v505
      %v570 = vmul.f32 %v417, %v506
      %v571 = vmul.f32 %v419, %v507
      %v572 = vmul.f32 %v422, %v508
      %v573 = vmul.f32 %v424, %v509
      %v574 = vmul.f32 %v427, %v510
      %v575 = vmul.f32 %v429, %v511
      %v576 = vmul.f32 %v441, %v480
      %v577 = vmul.f32 %v443, %v481
      %v578 = vmul.f32 %v446, %v482
      %v579 = vmul.f32 %v448, %v483
      %v580 = vmul.f32 %v451, %v484
      %v581 = vmul.f32 %v453, %v485
      %v582 = vmul.f32 %v456, %v486
      %v583 = vmul.f32 %v458, %v487
      %v584 = vmul.f32 %v461, %v488
      %v585 = vmul.f32 %v463, %v489
      %v586 = vmul.f32 %v466, %v490
      %v587 = vmul.f32 %v468, %v491
      %v588 = vmul.f32 %v471, %v492
      %v589 = vmul.f32 %v473, %v493
      %v590 = vmul.f32 %v476, %v494
      %v591 = vmul.f32 %v478, %v495
      %v592 = vadd.f32 %v560, %v576
      %v593 = vadd.f32 %v561, %v577
      %v594 = vadd.f32 %v562, %v578
      %v595 = vadd.f32 %v563, %v579
      %v596 = vadd.f32 %v564, %v580
      %v597 = vadd.f32 %v565, %v581
      %v598 = vadd.f32 %v566, %v582
      %v599 = vadd.f32 %v567, %v583
      %v600 = vadd.f32 %v568, %v584
      %v601 = vadd.f32 %v569, %v585
      %v602 = vadd.f32 %v570, %v586
      %v603 = vadd.f32 %v571, %v587
      %v604 = vadd.f32 %v572, %v588
      %v605 = vadd.f32 %v573, %v589
      %v606 = vadd.f32 %v574, %v590
      %v607 = vadd.f32 %v575, %v591
      %v608 = vpack.c.bf16 %v545, %v544
      %v609 = vpack.c.bf16 %v593, %v592
      %v610 = vpack.c.bf16 %v547, %v546
      %v611 = vpack.c.bf16 %v595, %v594
      %v612 = vpack.c.bf16 %v549, %v548
      %v613 = vpack.c.bf16 %v597, %v596
      %v614 = vpack.c.bf16 %v551, %v550
      %v615 = vpack.c.bf16 %v599, %v598
      %v616 = vpack.c.bf16 %v553, %v552
      %v617 = vpack.c.bf16 %v601, %v600
      %v618 = vpack.c.bf16 %v555, %v554
      %v619 = vpack.c.bf16 %v603, %v602
      %v620 = vpack.c.bf16 %v557, %v556
      %v621 = vpack.c.bf16 %v605, %v604
      %v622 = vpack.c.bf16 %v559, %v558
      %v623 = vpack.c.bf16 %v607, %v606
      %v624 = vld [vmem:[%s3] sm:$0xf]
      %v625 = vld [vmem:[%s3 + $0x4] sm:$0xf]
      %v626 = vld [vmem:[%s3 + $0x8] sm:$0xf]
      %v627 = vld [vmem:[%s3 + $0xc] sm:$0xf]
      %v628 = vld [vmem:[%s3 + $0x10] sm:$0xf]
      %v629 = vld [vmem:[%s3 + $0x14] sm:$0xf]
      %v630 = vld [vmem:[%s3 + $0x18] sm:$0xf]
      %v631 = vld [vmem:[%s3 + $0x1c] sm:$0xf]
      %v632 = vld [vmem:[%s3 + $0x20] sm:$0xf]
      %v633 = vld [vmem:[%s3 + $0x24] sm:$0xf]
      %v634 = vld [vmem:[%s3 + $0x28] sm:$0xf]
      %v635 = vld [vmem:[%s3 + $0x2c] sm:$0xf]
      %v636 = vld [vmem:[%s3 + $0x30] sm:$0xf]
      %v637 = vld [vmem:[%s3 + $0x34] sm:$0xf]
      %v638 = vld [vmem:[%s3 + $0x38] sm:$0xf]
      %v639 = vld [vmem:[%s3 + $0x3c] sm:$0xf]
      %v640 = vld [vmem:[%s3 + $0x40] sm:$0xf]
      %v641 = vld [vmem:[%s3 + $0x44] sm:$0xf]
      %v642 = vld [vmem:[%s3 + $0x48] sm:$0xf]
      %v643 = vld [vmem:[%s3 + $0x4c] sm:$0xf]
      %v644 = vld [vmem:[%s3 + $0x50] sm:$0xf]
      %v645 = vld [vmem:[%s3 + $0x54] sm:$0xf]
      %v646 = vld [vmem:[%s3 + $0x58] sm:$0xf]
      %v647 = vld [vmem:[%s3 + $0x5c] sm:$0xf]
      %v648 = vld [vmem:[%s3 + $0x60] sm:$0xf]
      %v649 = vld [vmem:[%s3 + $0x64] sm:$0xf]
      %v650 = vld [vmem:[%s3 + $0x68] sm:$0xf]
      %v651 = vld [vmem:[%s3 + $0x6c] sm:$0xf]
      %v652 = vld [vmem:[%s3 + $0x70] sm:$0xf]
      %v653 = vld [vmem:[%s3 + $0x74] sm:$0xf]
      %v654 = vld [vmem:[%s3 + $0x78] sm:$0xf]
      %v655 = vld [vmem:[%s3 + $0x7c] sm:$0xf]
      %v688 = vunpack.c.l.b16 %v624
      %v689 = vunpack.c.l.b16 %v625
      %v690 = vunpack.c.l.b16 %v626
      %v691 = vunpack.c.l.b16 %v627
      %v692 = vunpack.c.l.b16 %v628
      %v693 = vunpack.c.l.b16 %v629
      %v694 = vunpack.c.l.b16 %v630
      %v695 = vunpack.c.l.b16 %v631
      %v696 = vunpack.c.l.b16 %v632
      %v697 = vunpack.c.l.b16 %v633
      %v698 = vunpack.c.l.b16 %v634
      %v699 = vunpack.c.l.b16 %v635
      %v700 = vunpack.c.l.b16 %v636
      %v701 = vunpack.c.l.b16 %v637
      %v702 = vunpack.c.l.b16 %v638
      %v703 = vunpack.c.l.b16 %v639
      %v704 = vunpack.c.l.b16 %v640
      %v705 = vunpack.c.l.b16 %v641
      %v706 = vunpack.c.l.b16 %v642
      %v707 = vunpack.c.l.b16 %v643
      %v708 = vunpack.c.l.b16 %v644
      %v709 = vunpack.c.l.b16 %v645
      %v710 = vunpack.c.l.b16 %v646
      %v711 = vunpack.c.l.b16 %v647
      %v712 = vunpack.c.l.b16 %v648
      %v713 = vunpack.c.l.b16 %v649
      %v714 = vunpack.c.l.b16 %v650
      %v715 = vunpack.c.l.b16 %v651
      %v716 = vunpack.c.l.b16 %v652
      %v717 = vunpack.c.l.b16 %v653
      %v718 = vunpack.c.l.b16 %v654
      %v719 = vunpack.c.l.b16 %v655
      %v720 = vpack.c.b16 %v689, %v688
      %v721 = vpack.c.b16 %v691, %v690
      %v722 = vpack.c.b16 %v693, %v692
      %v723 = vpack.c.b16 %v695, %v694
      %v724 = vpack.c.b16 %v697, %v696
      %v725 = vpack.c.b16 %v699, %v698
      %v726 = vpack.c.b16 %v701, %v700
      %v727 = vpack.c.b16 %v703, %v702
      %v728 = vpack.c.b16 %v705, %v704
      %v729 = vpack.c.b16 %v707, %v706
      %v730 = vpack.c.b16 %v709, %v708
      %v731 = vpack.c.b16 %v711, %v710
      %v732 = vpack.c.b16 %v713, %v712
      %v733 = vpack.c.b16 %v715, %v714
      %v734 = vpack.c.b16 %v717, %v716
      %v735 = vpack.c.b16 %v719, %v718
      %752 = vmatpush.bf16.msra.mxu0 %v727
      %753 = vmatpush.bf16.msra.mxu0 %v726
      %754 = vmatpush.bf16.msra.mxu0 %v725
      %755 = vmatpush.bf16.msra.mxu0 %v724
      %756 = vmatpush.bf16.msra.mxu0 %v723
      %757 = vmatpush.bf16.msra.mxu0 %v722
      %758 = vmatpush.bf16.msra.mxu0 %v721
      %759 = vmatpush.bf16.msra.mxu0 %v720
      %760 = vmatmul.bf16.gmra.mxu0 %v608
      %v761 = vpop.f32.mrf.mxu0
      %v762 = vadd.f32 0.0, %v761
      %v763 = vpop.f32.mrf.mxu0
      %v764 = vadd.f32 0.0, %v763
      %765 = vmatmul.bf16.gmra.mxu0 %v610
      %v766 = vpop.f32.mrf.mxu0
      %v767 = vadd.f32 0.0, %v766
      %v768 = vpop.f32.mrf.mxu0
      %v769 = vadd.f32 0.0, %v768
      %770 = vmatmul.bf16.gmra.mxu0 %v612
      %v771 = vpop.f32.mrf.mxu0
      %v772 = vadd.f32 0.0, %v771
      %v773 = vpop.f32.mrf.mxu0
      %v774 = vadd.f32 0.0, %v773
      %775 = vmatmul.bf16.gmra.mxu0 %v614
      %v776 = vpop.f32.mrf.mxu0
      %v777 = vadd.f32 0.0, %v776
      %v778 = vpop.f32.mrf.mxu0
      %v779 = vadd.f32 0.0, %v778
      %780 = vmatmul.bf16.gmra.mxu0 %v616
      %v781 = vpop.f32.mrf.mxu0
      %v782 = vadd.f32 0.0, %v781
      %v783 = vpop.f32.mrf.mxu0
      %v784 = vadd.f32 0.0, %v783
      %785 = vmatmul.bf16.gmra.mxu0 %v618
      %v786 = vpop.f32.mrf.mxu0
      %v787 = vadd.f32 0.0, %v786
      %v788 = vpop.f32.mrf.mxu0
      %v789 = vadd.f32 0.0, %v788
      %790 = vmatmul.bf16.gmra.mxu0 %v620
      %v791 = vpop.f32.mrf.mxu0
      %v792 = vadd.f32 0.0, %v791
      %v793 = vpop.f32.mrf.mxu0
      %v794 = vadd.f32 0.0, %v793
      %795 = vmatmul.bf16.gmra.mxu0 %v622
      %v796 = vpop.f32.mrf.mxu0
      %v797 = vadd.f32 0.0, %v796
      %v798 = vpop.f32.mrf.mxu0
      %v799 = vadd.f32 0.0, %v798
      %800 = vdwg.mxu0
      %801 = vmatpush.bf16.msra.mxu0 %v735
      %802 = vmatpush.bf16.msra.mxu0 %v734
      %803 = vmatpush.bf16.msra.mxu0 %v733
      %804 = vmatpush.bf16.msra.mxu0 %v732
      %805 = vmatpush.bf16.msra.mxu0 %v731
      %806 = vmatpush.bf16.msra.mxu0 %v730
      %807 = vmatpush.bf16.msra.mxu0 %v729
      %808 = vmatpush.bf16.msra.mxu0 %v728
      %809 = vmatmul.bf16.gmra.mxu0 %v609
      %v810 = vpop.f32.mrf.mxu0
      %v811 = vadd.f32 %v762, %v810
      %v812 = vpop.f32.mrf.mxu0
      %v813 = vadd.f32 %v764, %v812
      %814 = vmatmul.bf16.gmra.mxu0 %v611
      %v815 = vpop.f32.mrf.mxu0
      %v816 = vadd.f32 %v767, %v815
      %v817 = vpop.f32.mrf.mxu0
      %v818 = vadd.f32 %v769, %v817
      %819 = vmatmul.bf16.gmra.mxu0 %v613
      %v820 = vpop.f32.mrf.mxu0
      %v821 = vadd.f32 %v772, %v820
      %v822 = vpop.f32.mrf.mxu0
      %v823 = vadd.f32 %v774, %v822
      %824 = vmatmul.bf16.gmra.mxu0 %v615
      %v825 = vpop.f32.mrf.mxu0
      %v826 = vadd.f32 %v777, %v825
      %v827 = vpop.f32.mrf.mxu0
      %v828 = vadd.f32 %v779, %v827
      %829 = vmatmul.bf16.gmra.mxu0 %v617
      %v830 = vpop.f32.mrf.mxu0
      %v831 = vadd.f32 %v782, %v830
      %v832 = vpop.f32.mrf.mxu0
      %v833 = vadd.f32 %v784, %v832
      %834 = vmatmul.bf16.gmra.mxu0 %v619
      %v835 = vpop.f32.mrf.mxu0
      %v836 = vadd.f32 %v787, %v835
      %v837 = vpop.f32.mrf.mxu0
      %v838 = vadd.f32 %v789, %v837
      %839 = vmatmul.bf16.gmra.mxu0 %v621
      %v840 = vpop.f32.mrf.mxu0
      %v841 = vadd.f32 %v792, %v840
      %v842 = vpop.f32.mrf.mxu0
      %v843 = vadd.f32 %v794, %v842
      %844 = vmatmul.bf16.gmra.mxu0 %v623
      %v845 = vpop.f32.mrf.mxu0
      %v846 = vadd.f32 %v797, %v845
      %v847 = vpop.f32.mrf.mxu0
      %v848 = vadd.f32 %v799, %v847
      %849 = vdwg.mxu0
      %850 = vst [vmem:[%s260] sm:$0xff] %v811
      %851 = vst [vmem:[%s260 + $0x8] sm:$0xff] %v813
      %852 = vst [vmem:[%s260 + $0x10] sm:$0xff] %v816
      %853 = vst [vmem:[%s260 + $0x18] sm:$0xff] %v818
      %854 = vst [vmem:[%s260 + $0x20] sm:$0xff] %v821
      %855 = vst [vmem:[%s260 + $0x28] sm:$0xff] %v823
      %856 = vst [vmem:[%s260 + $0x30] sm:$0xff] %v826
      %857 = vst [vmem:[%s260 + $0x38] sm:$0xff] %v828
      %858 = vst [vmem:[%s260 + $0x40] sm:$0xff] %v831
      %859 = vst [vmem:[%s260 + $0x48] sm:$0xff] %v833
      %860 = vst [vmem:[%s260 + $0x50] sm:$0xff] %v836
      %861 = vst [vmem:[%s260 + $0x58] sm:$0xff] %v838
      %862 = vst [vmem:[%s260 + $0x60] sm:$0xff] %v841
      %863 = vst [vmem:[%s260 + $0x68] sm:$0xff] %v843
      %864 = vst [vmem:[%s260 + $0x70] sm:$0xff] %v846
      %865 = vst [vmem:[%s260 + $0x78] sm:$0xff] %v848
      %s866 = smul.u32 16, %s19
      %p867 = scmp.lt.s32.totalorder %s20, 1
      %s868 = scalar_select %p867, %s20, 1
      %p869 = scmp.lt.s32.totalorder %s866, 15
      %s870 = scalar_select %p869, %s866, 15
      %s871 = smul.addr %s868, 16
      %s872 = sadd.s32 %s870, %s871
      %s873 = smul.addr %s872, 8
      %s874 = scalar_lea.vmem %s4, %s873
      // Predicated region
      $region37: #{_lambda_.1} parent=35 // pred_check
        %p875 = pneg %p143
      $region38: #{_lambda_.1} parent=35 // pred_check_branch
        %877 = sbr.rel (%p875) target = $region40
      $region39: #{_lambda_.1} parent=35 // pred_region
        %s878 = smul.u32 16, %s19
      $region40: #{_lambda_.1} parent=35 // pred_fallthru
        _
    $region36: #{_lambda_.1} parent=5 // pred_fallthru
      _
    %p879 = scmp.le.s32.totalorder 2, %s10
    // Predicated region
    $region41: #{_lambda_.1} parent=5 // pred_check
      %p880 = pneg %p879
    $region42: #{_lambda_.1} parent=5 // pred_check_branch
      %882 = sbr.rel (%p880) target = $region44
    $region43: #{_lambda_.1} parent=5 // pred_region
      %s883 = ssub.s32 %s10, 2
      // Predicated region
      $region45: #{_lambda_.1} parent=43 // pred_check
        %p884 = pneg %p149
      $region46: #{_lambda_.1} parent=43 // pred_check_branch
        %886 = sbr.rel (%p884) target = $region48
      $region47: #{_lambda_.1} parent=43 // pred_region
        %s887 = smul.u32 16, %s21
        %p888 = scmp.lt.s32.totalorder %s22, 1
        %s889 = scalar_select %p888, %s22, 1
        %p890 = scmp.lt.s32.totalorder %s887, 15
        %s891 = scalar_select %p890, %s887, 15
        %s892 = smul.addr %s889, 16
        %s893 = sadd.s32 %s891, %s892
        %s894 = smul.addr %s893, 8
        %s895 = scalar_lea.vmem %s4, %s894
      $region48: #{_lambda_.1} parent=43 // pred_fallthru
        _
    $region44: #{_lambda_.1} parent=5 // pred_fallthru
      _
  $region6: #{_lambda_.1} parent=0 // loop_footer
    %s14 = sadd.s32 1, %s10
  $region7: #{_lambda_.1} parent=0 // loop_footer_branch
    %9 = sbr.rel target = $region3
  $region8: #{_lambda_.1} parent=0 // loop_exit
    _

</llo_original>
